<compile_context>
chip_gen: v5e
topology: v5e:2x2
jax: 0.10.0
libtpu: 0.0.40
codegen_flags: <defaults>
</compile_context>

<pallas_src>
import functools

import jax
import jax.numpy as jnp
from jax.experimental import pallas as pl
from jax.experimental.pallas import tpu as pltpu


_LANES = 128
_TARGET_TILE_BYTES = 2 * 1024 * 1024  # ~2 MiB per input tile per buffer


def _smooth_l1_partial_kernel(pred_ref, true_ref, out_ref, *,
                              block_rows, reduce_axis):
    """Add this tile's smooth-L1 (beta=1) sum into a resident (1,8,128) block."""
    i = pl.program_id(reduce_axis)  # reduction axis (last grid dim)

    @pl.when(i == 0)
    def _():
        out_ref[...] = jnp.zeros_like(out_ref)

    # Cast in-kernel so HBM traffic stays at the native input width.
    p = pred_ref[...].astype(jnp.float32)
    t = true_ref[...].astype(jnp.float32)
    d = p - t
    ad = jnp.abs(d)
    # smooth_l1 with beta = 1.0 : 0.5*d^2 if |d| < 1 else |d| - 0.5
    loss = jnp.where(ad < 1.0, 0.5 * d * d, ad - 0.5)

    # vreg-shaped accumulation: sublane-aligned adds only, no cross-lane reduce.
    out_ref[...] += loss.reshape(block_rows // 8, 8, _LANES).sum(axis=0)[None]


def _smooth_l1_sum_ref(p, t):
    """Plain-JAX smooth-L1 sum (used for the tiny ragged tail)."""
    d = p.astype(jnp.float32) - t.astype(jnp.float32)
    ad = jnp.abs(d)
    return jnp.sum(jnp.where(ad < 1.0, 0.5 * d * d, ad - 0.5))


def _use_two_tensorcores():
    """True only on chips with two TensorCores (v7x) where CORE_PARALLEL helps.

    Conservative: any failure / ambiguity falls back to the single-core path,
    which is correct (and optimal) on v5e / v6e.
    """
    if not (hasattr(pltpu, "CORE_PARALLEL") and hasattr(pltpu, "ARBITRARY")):
        return False
    try:
        kind = jax.devices()[0].device_kind.lower()
    except Exception:
        return False
    return "v7" in kind


@functools.partial(jax.jit, static_argnames=("block_rows",))
def smooth_l1_loss_mean(pred, ytrue, *, block_rows=None):
    """Mean-reduced smooth L1 loss (beta=1.0), matching F.smooth_l1_loss."""
    assert pred.shape == ytrue.shape, "PRED and YTRUE must have the same shape"
    n = pred.size
    if n == 0:
        return jnp.float32(0.0)

    p_flat = pred.reshape(-1)   # free reshape, native dtype
    t_flat = ytrue.reshape(-1)

    rows = n // _LANES          # number of full 128-lane rows

    # Sublane packing granularity of the narrowest input dtype (f32->8, bf16->16).
    pack = max(1,
               4 // jnp.dtype(pred.dtype).itemsize,
               4 // jnp.dtype(ytrue.dtype).itemsize)
    sub = 8 * pack

    # Tile height targeting ~2 MiB per input buffer (4096 rows f32, 8192 bf16),
    # rounded to a sublane multiple and shrunk to the data.
    widest = max(jnp.dtype(pred.dtype).itemsize, jnp.dtype(ytrue.dtype).itemsize)
    if block_rows is None:
        block_rows = _TARGET_TILE_BYTES // (_LANES * widest)
    br = min(int(block_rows), rows)
    br = (br // sub) * sub

    num_cores = 2 if _use_two_tensorcores() else 1

    nblocks = (rows // br) if br > 0 else 0
    blocks_per_core = nblocks // num_cores
    if blocks_per_core == 0:
        num_cores = 1
        blocks_per_core = nblocks
    rows_main = num_cores * blocks_per_core * br
    n_main = rows_main * _LANES

    total = jnp.float32(0.0)

    if rows_main > 0:
        def slab(x):
            if n_main != n:
                x = x[:n_main]
            return x.reshape(rows_main, _LANES)

        if num_cores > 1:
            # v7x: shard the leading size-2 axis across both TensorCores; each
            # core accumulates into its own (1, 8, 128) output block.
            kernel = functools.partial(_smooth_l1_partial_kernel,
                                       block_rows=br, reduce_axis=1)
            grid = (num_cores, blocks_per_core)
            in_map = lambda c, i: (c * blocks_per_core + i, 0)
            out_spec = pl.BlockSpec((1, 8, _LANES), lambda c, i: (c, 0, 0))
            dims = (pltpu.CORE_PARALLEL, pltpu.ARBITRARY)
        else:
            # v5e / v6e: plain 1-D serial grid, single resident accumulator.
            kernel = functools.partial(_smooth_l1_partial_kernel,
                                       block_rows=br, reduce_axis=0)
            grid = (blocks_per_core,)
            in_map = lambda i: (i, 0)
            out_spec = pl.BlockSpec((1, 8, _LANES), lambda i: (0, 0, 0))
            dims = ("arbitrary",)

        partials = pl.pallas_call(
            kernel,
            out_shape=jax.ShapeDtypeStruct((num_cores, 8, _LANES), jnp.float32),
            grid_spec=pltpu.PrefetchScalarGridSpec(
                num_scalar_prefetch=0,
                grid=grid,
                in_specs=[
                    pl.BlockSpec((br, _LANES), in_map),
                    pl.BlockSpec((br, _LANES), in_map),
                ],
                out_specs=out_spec,
            ),
            compiler_params=pltpu.CompilerParams(dimension_semantics=dims),
        )(slab(p_flat), slab(t_flat))

        total = total + jnp.sum(partials)

    if n_main != n:
        # Ragged tail (< num_cores*br*128 elements): tiny vs. the main slab,
        # summed in plain JAX so the kernel needs no masking at all.
        total = total + _smooth_l1_sum_ref(p_flat[n_main:], t_flat[n_main:])

    return total / jnp.float32(n)


class MAE:
    """JAX/Pallas equivalent of the PyTorch `mae` module (no parameters)."""

    def __init__(self, weight=None, size_average=True):
        del weight, size_average  # unused, matches the PyTorch signature

    def __call__(self, PRED, YTRUE):
        return smooth_l1_loss_mean(PRED, YTRUE)


def _reference_smooth_l1_mean(pred, ytrue):
    d = pred.astype(jnp.float32) - ytrue.astype(jnp.float32)
    ad = jnp.abs(d)
    loss = jnp.where(ad < 1.0, 0.5 * d * d, ad - 0.5)
    return jnp.mean(loss)


if __name__ == "__main__":
    key = jax.random.PRNGKey(0)
    k1, k2, k3, k4 = jax.random.split(key, 4)

    loss_fn = MAE()

    # Small NCHW-style prediction / target pair (lane-aligned case).
    pred = jax.random.normal(k1, (2, 4, 16, 16), dtype=jnp.float32) * 2.0
    ytrue = jax.random.normal(k2, (2, 4, 16, 16), dtype=jnp.float32) * 2.0
    loss = jax.block_until_ready(loss_fn(pred, ytrue))
    ref = jax.block_until_ready(_reference_smooth_l1_mean(pred, ytrue))
    assert jnp.allclose(loss, ref, rtol=1e-5, atol=1e-6), (loss, ref)

    # Ragged case (exercises the kernel + plain-JAX tail path).
    pred2 = jax.random.normal(k3, (3, 5, 7, 11), dtype=jnp.float32) * 2.0
    ytrue2 = jax.random.normal(k4, (3, 5, 7, 11), dtype=jnp.float32) * 2.0
    loss2 = jax.block_until_ready(loss_fn(pred2, ytrue2))
    ref2 = jax.block_until_ready(_reference_smooth_l1_mean(pred2, ytrue2))
    assert jnp.allclose(loss2, ref2, rtol=1e-5, atol=1e-6), (loss2, ref2)

    print("KERNEL_OK")
</pallas_src>

<mosaic_0001>
module attributes {stable_mosaic.version = 11 : i64} {
  func.func @_smooth_l1_partial_kernel(%arg0: i32, %arg1: memref<16x128xf32, #tpu.memory_space<vmem>>, %arg2: memref<16x128xf32, #tpu.memory_space<vmem>>, %arg3: memref<1x8x128xf32, #tpu.memory_space<vmem>>) attributes {dimension_semantics = [#tpu.dimension_semantics<arbitrary>], iteration_bounds = array<i64: 1>, scalar_prefetch = 0 : i64, scratch_operands = 0 : i64, tpu.core_type = #tpu.core_type<tc>, window_params = [{transform_indices = @transform_0, window_bounds = array<i64: 16, 128>}, {transform_indices = @transform_1, window_bounds = array<i64: 16, 128>}, {pipeline_mode = #tpu.pipeline_mode<synchronous>, transform_indices = @transform_2, window_bounds = array<i64: 1, 8, 128>}]} {
    %c0_i32 = arith.constant 0 : i32
    %0 = arith.cmpi eq, %arg0, %c0_i32 : i32
    %1 = arith.extui %0 : i1 to i32
    %c0_i32_0 = arith.constant 0 : i32
    %2 = arith.cmpi ne, %1, %c0_i32_0 : i32
    scf.if %2 {
      %cst_13 = arith.constant 0.000000e+00 : f32
      %21 = vector.broadcast %cst_13 : f32 to vector<1x8x128xf32>
      %c0_14 = arith.constant 0 : index
      %c0_15 = arith.constant 0 : index
      %c0_16 = arith.constant 0 : index
      %22 = vector.load %arg3[%c0_14, %c0_15, %c0_16] : memref<1x8x128xf32, #tpu.memory_space<vmem>>, vector<1x8x128xf32>
      tpu.vector_store %arg3[%c0_14, %c0_15, %c0_16], %21 {strides = array<i32>} : memref<1x8x128xf32, #tpu.memory_space<vmem>>, vector<1x8x128xf32>,
    } else {
    }
    %c0 = arith.constant 0 : index
    %c0_1 = arith.constant 0 : index
    %3 = vector.load %arg1[%c0, %c0_1] : memref<16x128xf32, #tpu.memory_space<vmem>>, vector<16x128xf32>
    %c0_2 = arith.constant 0 : index
    %c0_3 = arith.constant 0 : index
    %4 = vector.load %arg2[%c0_2, %c0_3] : memref<16x128xf32, #tpu.memory_space<vmem>>, vector<16x128xf32>
    %5 = arith.subf %3, %4 : vector<16x128xf32>
    %6 = math.absf %5 : vector<16x128xf32>
    %cst = arith.constant 1.000000e+00 : f32
    %7 = vector.broadcast %cst : f32 to vector<16x128xf32>
    %8 = arith.cmpf olt, %6, %7 : vector<16x128xf32>
    %cst_4 = arith.constant 5.000000e-01 : f32
    %9 = vector.broadcast %cst_4 : f32 to vector<16x128xf32>
    %10 = arith.mulf %9, %5 : vector<16x128xf32>
    %11 = arith.mulf %10, %5 : vector<16x128xf32>
    %cst_5 = arith.constant 5.000000e-01 : f32
    %12 = vector.broadcast %cst_5 : f32 to vector<16x128xf32>
    %13 = arith.subf %6, %12 : vector<16x128xf32>
    %14 = arith.select %8, %11, %13 : vector<16x128xi1>, vector<16x128xf32>
    %c0_6 = arith.constant 0 : index
    %c0_7 = arith.constant 0 : index
    %c0_8 = arith.constant 0 : index
    %15 = vector.load %arg3[%c0_6, %c0_7, %c0_8] : memref<1x8x128xf32, #tpu.memory_space<vmem>>, vector<1x8x128xf32>
    %16 = vector.shape_cast %14 : vector<16x128xf32> to vector<2x8x128xf32>
    %cst_9 = arith.constant dense<0.000000e+00> : vector<8x128xf32>
    %17 = vector.multi_reduction <add>, %16, %cst_9 [0] : vector<2x8x128xf32> to vector<8x128xf32>
    %18 = vector.shape_cast %17 : vector<8x128xf32> to vector<1x8x128xf32>
    %19 = arith.addf %15, %18 : vector<1x8x128xf32>
    %c0_10 = arith.constant 0 : index
    %c0_11 = arith.constant 0 : index
    %c0_12 = arith.constant 0 : index
    %20 = vector.load %arg3[%c0_10, %c0_11, %c0_12] : memref<1x8x128xf32, #tpu.memory_space<vmem>>, vector<1x8x128xf32>
    tpu.vector_store %arg3[%c0_10, %c0_11, %c0_12], %19 {strides = array<i32>} : memref<1x8x128xf32, #tpu.memory_space<vmem>>, vector<1x8x128xf32>,
    return
  }
  func.func @transform_0(%arg0: i32) -> (i32, i32) {
    %c0_i32 = arith.constant 0 : i32
    %c0_i32_0 = arith.constant 0 : i32
    return %arg0, %c0_i32 : i32, i32
  }
  func.func @transform_1(%arg0: i32) -> (i32, i32) {
    %c0_i32 = arith.constant 0 : i32
    %c0_i32_0 = arith.constant 0 : i32
    return %arg0, %c0_i32 : i32, i32
  }
  func.func @transform_2(%arg0: i32) -> (i32, i32, i32) {
    %c0_i32 = arith.constant 0 : i32
    %c0_i32_0 = arith.constant 0 : i32
    %c0_i32_1 = arith.constant 0 : i32
    %c0_i32_2 = arith.constant 0 : i32
    return %c0_i32, %c0_i32_0, %c0_i32_1 : i32, i32, i32
  }
}

</mosaic_0001>

<llo_original>
// kernel: smooth_l1_loss_mean.1
$region0: #{smooth_l1_loss_mean.1}
  #allocation0 [shape = 'u32[]', space=smem, size = 0x4, offset = 0x4, fixed_abs, tag = 'smem constant byte address 0x4 - core index']
  #allocation1 [shape = 'u32[72,128]{1,0:T(1,128)}', space=vmem, size = 0x9000, scoped, tag = 'internal scratch']
  %s0 = inlined_call_operand.vmem [shape: f32[16,128], index: 0, kind: input, shape index: {}]
  %s1 = inlined_call_operand.vmem [shape: f32[16,128], index: 1, kind: input, shape index: {}]
  %s2 = inlined_call_operand.vmem [shape: f32[1,8,128], index: 2, kind: output, shape index: {}]
  %s3 = sld [smem:[#allocation0]]
  $region22: #{smooth_l1_loss_mean.1} parent=0
    _
  %s5 = ssub.s32 1, %s3
  %s6 = scalar_select 0, %s5, %s3
  // Predicated region
  $region2: #{smooth_l1_loss_mean.1} parent=0 // pred_check
    _
  $region3: #{smooth_l1_loss_mean.1} parent=0 // pred_check_branch
    %8 = sbr.rel (0) target = $region5
  $region4: #{smooth_l1_loss_mean.1} parent=0 // pred_region
    _
  $region5: #{smooth_l1_loss_mean.1} parent=0 // pred_fallthru
    _
  // Predicated region
  $region6: #{smooth_l1_loss_mean.1} parent=0 // pred_check
    _
  $region7: #{smooth_l1_loss_mean.1} parent=0 // pred_check_branch
    %10 = sbr.rel (0) target = $region9
  $region8: #{smooth_l1_loss_mean.1} parent=0 // pred_region
    _
  $region9: #{smooth_l1_loss_mean.1} parent=0 // pred_fallthru
    _
  %p11 = scmp.eq.s32.totalorder 0, 0
  // Predicated region
  $region10: #{smooth_l1_loss_mean.1} parent=0 // pred_check
    %p12 = pneg %p11
  $region11: #{smooth_l1_loss_mean.1} parent=0 // pred_check_branch
    %14 = sbr.rel (%p12) target = $region13
  $region12: #{smooth_l1_loss_mean.1} parent=0 // pred_region
    %15 = vst [vmem:[%s2] sm:$0xff] 0.0
  $region13: #{smooth_l1_loss_mean.1} parent=0 // pred_fallthru
    _
  %v16 = vld [vmem:[%s0] sm:$0xff]
  %v17 = vld [vmem:[%s0 + $0x8] sm:$0xff]
  %v18 = vld [vmem:[%s1] sm:$0xff]
  %v19 = vld [vmem:[%s1 + $0x8] sm:$0xff]
  %v20 = vsub.f32 %v16, %v18
  %v21 = vsub.f32 %v17, %v19
  %v22 = vand.u32 2147483647, %v20
  %v23 = vand.u32 2147483647, %v21
  %vm24 = vcmp.lt.f32.partialorder %v22, 1.0
  %vm25 = vcmp.lt.f32.partialorder %v23, 1.0
  %v26 = vmul.f32 %v20, 0.5
  %v27 = vmul.f32 %v21, 0.5
  %v28 = vmul.f32 %v26, %v20
  %v29 = vmul.f32 %v27, %v21
  %v30 = vsub.f32 %v22, 0.5
  %v31 = vsub.f32 %v23, 0.5
  %v32 = vsel %vm24, %v28, %v30
  %v33 = vsel %vm25, %v29, %v31
  %v34 = vld [vmem:[%s2] sm:$0xff]
  %v35 = vadd.f32 %v32, %v33
  %v36 = vadd.f32 %v34, %v35
  %37 = vst [vmem:[%s2] sm:$0xff] %v36
  // Predicated region
  $region14: #{smooth_l1_loss_mean.1} parent=0 // pred_check
    _
  $region15: #{smooth_l1_loss_mean.1} parent=0 // pred_check_branch
    %39 = sbr.rel (0) target = $region17
  $region16: #{smooth_l1_loss_mean.1} parent=0 // pred_region
    _
  $region17: #{smooth_l1_loss_mean.1} parent=0 // pred_fallthru
    _
  // Predicated region
  $region18: #{smooth_l1_loss_mean.1} parent=0 // pred_check
    _
  $region19: #{smooth_l1_loss_mean.1} parent=0 // pred_check_branch
    %41 = sbr.rel (0) target = $region21
  $region20: #{smooth_l1_loss_mean.1} parent=0 // pred_region
    _
  $region21: #{smooth_l1_loss_mean.1} parent=0 // pred_fallthru
    _

</llo_original>
